<compile_context>
chip_gen: v7x
topology: tpu7x:2x2x1
jax: 0.10.0
libtpu: 0.0.40
codegen_flags: <defaults>
</compile_context>

<pallas_src>
import jax
import jax.numpy as jnp
from jax.experimental import pallas as pl
from jax.experimental.pallas import tpu as pltpu

_NEG_BIG = -1e30  # finite "-inf": exp(_NEG_BIG - realistic_logit) underflows to 0


def _round_up(v, m):
    return ((v + m - 1) // m) * m


def _vmem_capacity_bytes():
    try:
        cap = int(pltpu.get_tpu_info().vmem_capacity_bytes)
        return max(16 << 20, min(cap, 128 << 20))
    except Exception:
        return 64 << 20  # conservative fallback (v7x per-core VMEM)


def _num_tensorcores():
    # v7x has 2 TensorCores per chip; v5e/v6e have 1.  A size-2 "parallel"
    # leading grid axis lets Mosaic shard the N-tiles across both cores.
    try:
        if "v7" in jax.devices()[0].device_kind.lower():
            return 2
    except Exception:
        pass
    return 1


def _pick_row_tile(n_per_split, per_row_bytes, avail_bytes):
    """Instance-tile size tn: multiple of 256/128 (MXU/lane friendly) unless a
    single tile covers the whole split, in which case a multiple of 8."""
    tn_budget = max(8, min(2048, avail_bytes // per_row_bytes))
    if n_per_split <= tn_budget:
        return _round_up(max(n_per_split, 1), 8)  # one tile per split
    if tn_budget >= 256:
        return (tn_budget // 256) * 256
    # TODO(synk): for very large D (resident fused weight + two (128, Dp) x
    # tiles exceeding VMEM, esp. v7x's 64 MiB) a K-tiling axis over D would be
    # needed; fall back to the minimum lane-aligned tile instead.
    return 128


def prepare_params(params, compute_dtype=jnp.float32):
    """Build the fused / lane-padded kernel parameters ONCE (hoisted out of the
    per-call path).  compute_dtype=jnp.bfloat16 opts into bf16 streaming/matmul
    (softmax and accumulation stay f32)."""
    wv, bv, wu, bu, ww, bw = params
    del bw  # softmax is shift-invariant: a constant added to every logit is a no-op
    d, h = wv.shape
    dp = _round_up(d, 128)          # lane-padded feature dim
    wp = _round_up(2 * h, 128)      # packed projection width (V in [0:h], U in [h:2h])
    w = jnp.zeros((dp, wp), jnp.float32)
    w = w.at[:d, :h].set(wv.astype(jnp.float32))
    w = w.at[:d, h:2 * h].set(wu.astype(jnp.float32))
    b = jnp.zeros((1, wp), jnp.float32)
    b = b.at[:, :h].set(bv.reshape(1, h).astype(jnp.float32))
    b = b.at[:, h:2 * h].set(bu.reshape(1, h).astype(jnp.float32))
    ww_row = jnp.zeros((1, wp), jnp.float32)
    ww_row = ww_row.at[:, :h].set(ww.reshape(1, h).astype(jnp.float32))
    return {"w_fused": w.astype(compute_dtype), "b_fused": b, "ww_row": ww_row,
            "h": h, "d": d, "dp": dp, "wp": wp}


def gated_attention(x, params, num_splits=None):
    """x: (N, C, H, W) or (N, D).  params: raw init_params tuple or the dict
    returned by prepare_params.  Returns (z: (1, D), A: (1, N))."""
    prepped = params if isinstance(params, dict) else prepare_params(params)
    w, b, ww_row = prepped["w_fused"], prepped["b_fused"], prepped["ww_row"]
    h, d, dp, wp = prepped["h"], prepped["d"], prepped["dp"], prepped["wp"]

    n = x.shape[0]
    x2d = x.reshape(n, -1)                      # torch.flatten(x, 1)
    assert x2d.shape[1] == d, (x2d.shape, d)
    if x2d.dtype != w.dtype:
        x2d = x2d.astype(w.dtype)
    itemsize = x2d.dtype.itemsize

    if num_splits is None:
        num_splits = _num_tensorcores()
    num_splits = max(1, int(num_splits))

    # ---- generation-aware VMEM budget / tile sizing -------------------------
    cap = _vmem_capacity_bytes()
    fixed = (2 * dp * wp * w.dtype.itemsize     # resident fused weight (2 buffers)
             + 4 * wp * 4                       # fused bias + ww row
             + 3 * dp * 4                       # z accumulator scratch + z-partial out
             + 4 * 128 * 4)                     # m/l partial outputs
    per_row = 2 * dp * itemsize + 2 * 4         # x tile (2 buffers) + logits tile
    avail = max(int(cap * 0.7) - fixed, 16 * per_row)
    n_per_split = (n + num_splits - 1) // num_splits
    tn = _pick_row_tile(n_per_split, per_row, avail)
    n_split_pad = _round_up(n_per_split, tn)
    tiles_per_split = n_split_pad // tn
    n_total = num_splits * n_split_pad

    pad_rows, pad_cols = n_total - n, dp - d
    if pad_rows or pad_cols:
        x2d = jnp.pad(x2d, ((0, pad_rows), (0, pad_cols)))

    roll_shift = wp - h                          # == -h mod wp: lane h+j -> lane j

    def kernel(x_ref, w_ref, b_ref, ww_ref,
               logit_ref, m_out, l_out, z_out,
               m_scr, l_scr, acc_scr):
        s = pl.program_id(0)                     # split (TensorCore) index
        j = pl.program_id(1)                     # tile index within split

        @pl.when(j == 0)
        def _init():
            m_scr[...] = jnp.full((1, 1), _NEG_BIG, jnp.float32)
            l_scr[...] = jnp.zeros((1, 1), jnp.float32)
            acc_scr[...] = jnp.zeros((1, dp), jnp.float32)

        x_t = x_ref[...]                                            # (tn, dp)

        # Fused V/U projection: one (tn,dp)x(dp,wp) MXU pass, f32 accumulate.
        proj = jnp.dot(x_t, w_ref[...],
                       preferred_element_type=jnp.float32) + b_ref[...]
        # Lanes [0:h] hold V pre-acts, [h:2h] hold U pre-acts.  Realign the U
        # half onto lanes [0:h] with an XLU roll (free slot).  Lanes >= h of
        # `gated` are garbage but finite and are zeroed by ww_row below.
        a_v = jnp.tanh(proj)
        a_u = jax.nn.sigmoid(pltpu.roll(proj, roll_shift, 1))
        gated = a_v * a_u                                           # (tn, wp)

        # Lane-dense logits: (1, tn) = ww_row . gated^T.
        logits = jax.lax.dot_general(
            ww_ref[...], gated, (((1,), (1,)), ((), ())),
            preferred_element_type=jnp.float32)

        # Mask padded instance rows with a finite very-negative value.
        row0 = (s * tiles_per_split + j) * tn
        col = row0 + jax.lax.broadcasted_iota(jnp.int32, (1, tn), 1)
        logits = jnp.where(col < n, logits, _NEG_BIG)

        logit_ref[...] = logits[None]                               # (1, 1, tn)

        # Online-softmax update of running max / denominator / z accumulator.
        m_prev = m_scr[...]                                         # (1, 1)
        m_new = jnp.maximum(m_prev, jnp.max(logits, axis=1, keepdims=True))
        alpha = jnp.exp(m_prev - m_new)
        p = jnp.exp(logits - m_new)                                 # (1, tn)
        l_scr[...] = alpha * l_scr[...] + jnp.sum(p, axis=1, keepdims=True)
        pv = p if x_t.dtype == jnp.float32 else p.astype(x_t.dtype)
        acc_scr[...] = alpha * acc_scr[...] + jnp.dot(
            pv, x_t, preferred_element_type=jnp.float32)
        m_scr[...] = m_new

        @pl.when(j == pl.num_programs(1) - 1)
        def _finalize():
            m_out[...] = jnp.broadcast_to(m_scr[...].reshape(1, 1, 1), (1, 1, 128))
            l_out[...] = jnp.broadcast_to(l_scr[...].reshape(1, 1, 1), (1, 1, 128))
            z_out[...] = acc_scr[...].reshape(1, 1, dp)

    cost = pl.CostEstimate(
        flops=2 * n_total * dp * wp + 2 * n_total * wp + 2 * n_total * dp,
        transcendentals=2 * n_total * wp + 2 * n_total,
        bytes_accessed=n_total * dp * itemsize + 2 * dp * wp * w.dtype.itemsize
        + 4 * (n_total + num_splits * (dp + 256) + 3 * wp),
    )

    logits_p, m_p, l_p, z_p = pl.pallas_call(
        kernel,
        out_shape=(
            jax.ShapeDtypeStruct((num_splits, 1, n_split_pad), jnp.float32),
            jax.ShapeDtypeStruct((num_splits, 1, 128), jnp.float32),
            jax.ShapeDtypeStruct((num_splits, 1, 128), jnp.float32),
            jax.ShapeDtypeStruct((num_splits, 1, dp), jnp.float32),
        ),
        grid=(num_splits, tiles_per_split),
        in_specs=[
            pl.BlockSpec((tn, dp), lambda s, j: (s * tiles_per_split + j, 0)),
            pl.BlockSpec((dp, wp), lambda s, j: (0, 0)),     # fused weight (resident)
            pl.BlockSpec((1, wp), lambda s, j: (0, 0)),      # fused bias
            pl.BlockSpec((1, wp), lambda s, j: (0, 0)),      # attention-weight row
        ],
        out_specs=(
            pl.BlockSpec((1, 1, tn), lambda s, j: (s, 0, j)),    # raw logits tiles
            pl.BlockSpec((1, 1, 128), lambda s, j: (s, 0, 0)),   # per-split max
            pl.BlockSpec((1, 1, 128), lambda s, j: (s, 0, 0)),   # per-split denom
            pl.BlockSpec((1, 1, dp), lambda s, j: (s, 0, 0)),    # per-split z partial
        ),
        scratch_shapes=[
            pltpu.VMEM((1, 1), jnp.float32),    # running max m
            pltpu.VMEM((1, 1), jnp.float32),    # running denominator l
            pltpu.VMEM((1, dp), jnp.float32),   # unnormalized z accumulator
        ],
        compiler_params=pltpu.CompilerParams(
            dimension_semantics=("parallel", "arbitrary"),
            vmem_limit_bytes=max(32 << 20, cap - (2 << 20)),
        ),
        cost_estimate=cost,
    )(x2d, w, b, ww_row)

    # ---- tiny flash-style combine of the per-split partials (plain JAX) -----
    m_s = m_p[:, 0, 0]                           # (num_splits,)
    l_s = l_p[:, 0, 0]
    z_s = z_p[:, 0, :]                           # (num_splits, dp)
    m_g = jnp.max(m_s)
    scale = jnp.exp(m_s - m_g)                   # all-padding split -> exactly 0
    inv_l = 1.0 / jnp.sum(scale * l_s)
    z = (jnp.sum(scale[:, None] * z_s, axis=0, keepdims=True) * inv_l)[:, :d]
    a = (jnp.exp(logits_p[:, 0, :] - m_g) * inv_l).reshape(1, n_total)[:, :n]
    return z.astype(x.dtype), a


def init_params(key, input_size, hidden_size):
    """Deterministic parameter init. Weights stored as (in, out)."""
    k = jax.random.split(key, 6)
    scale_v = 1.0 / jnp.sqrt(input_size)
    scale_w = 1.0 / jnp.sqrt(hidden_size)
    wv = jax.random.uniform(k[0], (input_size, hidden_size), jnp.float32,
                            -scale_v, scale_v)
    bv = jax.random.uniform(k[1], (1, hidden_size), jnp.float32, -scale_v, scale_v)
    wu = jax.random.uniform(k[2], (input_size, hidden_size), jnp.float32,
                            -scale_v, scale_v)
    bu = jax.random.uniform(k[3], (1, hidden_size), jnp.float32, -scale_v, scale_v)
    ww = jax.random.uniform(k[4], (hidden_size, 1), jnp.float32, -scale_w, scale_w)
    bw = jax.random.uniform(k[5], (1, 1), jnp.float32, -scale_w, scale_w)
    return wv, bv, wu, bu, ww, bw


def gated_attention_ref(x, params):
    """Pure-JAX reference mirroring the PyTorch forward."""
    wv, bv, wu, bu, ww, bw = params
    x2d = x.reshape(x.shape[0], -1).astype(jnp.float32)
    a_v = jnp.tanh(x2d @ wv + bv)
    a_u = jax.nn.sigmoid(x2d @ wu + bu)
    a = (a_v * a_u) @ ww + bw                 # (N, 1)
    a = a.T                                   # (1, N)
    a = jax.nn.softmax(a, axis=1)
    z = a @ x2d                               # (1, D)
    return z, a


if __name__ == "__main__":
    key = jax.random.PRNGKey(0)
    k_x, k_p = jax.random.split(key)

    # Bag of N=8 instances, each a 4x8x8 feature map -> input_size = 256.
    N, C, H, W = 8, 4, 8, 8
    input_size = C * H * W
    hidden_size = 32

    x = jax.random.normal(k_x, (N, C, H, W), dtype=jnp.float32)
    params = init_params(k_p, input_size, hidden_size)
    prepped = prepare_params(params)          # hoisted out of the per-call path

    z, a = gated_attention(x, prepped)
    jax.block_until_ready((z, a))

    z_exp, a_exp = gated_attention_ref(x, params)
    assert z.shape == (1, input_size) and a.shape == (1, N)
    assert jnp.allclose(z, z_exp, atol=1e-4, rtol=1e-4)
    assert jnp.allclose(a, a_exp, atol=1e-5, rtol=1e-4)
    assert jnp.allclose(jnp.sum(a), 1.0, atol=1e-5)

    print("KERNEL_OK")
</pallas_src>

<mosaic_0001>
module attributes {stable_mosaic.version = 11 : i64} {
  func.func @kernel(%arg0: i32, %arg1: i32, %arg2: memref<8x256xf32, #tpu.memory_space<vmem>>, %arg3: memref<256x128xf32, #tpu.memory_space<vmem>>, %arg4: memref<1x128xf32, #tpu.memory_space<vmem>>, %arg5: memref<1x128xf32, #tpu.memory_space<vmem>>, %arg6: memref<1x1x8xf32, #tpu.memory_space<vmem>>, %arg7: memref<1x1x128xf32, #tpu.memory_space<vmem>>, %arg8: memref<1x1x128xf32, #tpu.memory_space<vmem>>, %arg9: memref<1x1x256xf32, #tpu.memory_space<vmem>>, %arg10: memref<1x1xf32, #tpu.memory_space<vmem>>, %arg11: memref<1x1xf32, #tpu.memory_space<vmem>>, %arg12: memref<1x256xf32, #tpu.memory_space<vmem>>) attributes {dimension_semantics = [#tpu.dimension_semantics<parallel>, #tpu.dimension_semantics<arbitrary>], iteration_bounds = array<i64: 1, 1>, scalar_prefetch = 0 : i64, scratch_operands = 3 : i64, tpu.core_type = #tpu.core_type<tc>, window_params = [{transform_indices = @transform_0, window_bounds = array<i64: 8, 256>}, {pipeline_mode = #tpu.pipeline_mode<synchronous>, transform_indices = @transform_1, window_bounds = array<i64: 256, 128>}, {pipeline_mode = #tpu.pipeline_mode<synchronous>, transform_indices = @transform_2, window_bounds = array<i64: 1, 128>}, {pipeline_mode = #tpu.pipeline_mode<synchronous>, transform_indices = @transform_3, window_bounds = array<i64: 1, 128>}, {transform_indices = @transform_4, window_bounds = array<i64: 1, 1, 8>}, {transform_indices = @transform_5, window_bounds = array<i64: 1, 1, 128>}, {transform_indices = @transform_6, window_bounds = array<i64: 1, 1, 128>}, {transform_indices = @transform_7, window_bounds = array<i64: 1, 1, 256>}]} {
    %c0_i32 = arith.constant 0 : i32
    %0 = arith.cmpi eq, %arg1, %c0_i32 : i32
    %1 = arith.extui %0 : i1 to i32
    %c0_i32_0 = arith.constant 0 : i32
    %2 = arith.cmpi ne, %1, %c0_i32_0 : i32
    scf.if %2 {
      %cst_32 = arith.constant -1.000000e+30 : f32
      %56 = vector.broadcast %cst_32 : f32 to vector<1x1xf32>
      %c0_33 = arith.constant 0 : index
      %c0_34 = arith.constant 0 : index
      %57 = vector.load %arg10[%c0_33, %c0_34] : memref<1x1xf32, #tpu.memory_space<vmem>>, vector<1x1xf32>
      tpu.vector_store %arg10[%c0_33, %c0_34], %56 {strides = array<i32>} : memref<1x1xf32, #tpu.memory_space<vmem>>, vector<1x1xf32>,
      %cst_35 = arith.constant 0.000000e+00 : f32
      %58 = vector.broadcast %cst_35 : f32 to vector<1x1xf32>
      %c0_36 = arith.constant 0 : index
      %c0_37 = arith.constant 0 : index
      %59 = vector.load %arg11[%c0_36, %c0_37] : memref<1x1xf32, #tpu.memory_space<vmem>>, vector<1x1xf32>
      tpu.vector_store %arg11[%c0_36, %c0_37], %58 {strides = array<i32>} : memref<1x1xf32, #tpu.memory_space<vmem>>, vector<1x1xf32>,
      %cst_38 = arith.constant 0.000000e+00 : f32
      %60 = vector.broadcast %cst_38 : f32 to vector<1x256xf32>
      %c0_39 = arith.constant 0 : index
      %c0_40 = arith.constant 0 : index
      %61 = vector.load %arg12[%c0_39, %c0_40] : memref<1x256xf32, #tpu.memory_space<vmem>>, vector<1x256xf32>
      tpu.vector_store %arg12[%c0_39, %c0_40], %60 {strides = array<i32>} : memref<1x256xf32, #tpu.memory_space<vmem>>, vector<1x256xf32>,
    } else {
    }
    %c0 = arith.constant 0 : index
    %c0_1 = arith.constant 0 : index
    %3 = vector.load %arg2[%c0, %c0_1] : memref<8x256xf32, #tpu.memory_space<vmem>>, vector<8x256xf32>
    %c0_2 = arith.constant 0 : index
    %c0_3 = arith.constant 0 : index
    %4 = vector.load %arg3[%c0_2, %c0_3] : memref<256x128xf32, #tpu.memory_space<vmem>>, vector<256x128xf32>
    %cst = arith.constant dense<0.000000e+00> : vector<8x128xf32>
    %5 = tpu.matmul %3, %4, %cst {dimension_numbers = #tpu.dot_dimension_numbers<[1], [0], [0], [1], [0, 0, 1, 1], [], []>} : vector<8x256xf32>, vector<256x128xf32>, vector<8x128xf32> -> vector<8x128xf32>
    %c0_4 = arith.constant 0 : index
    %c0_5 = arith.constant 0 : index
    %6 = vector.load %arg4[%c0_4, %c0_5] : memref<1x128xf32, #tpu.memory_space<vmem>>, vector<1x128xf32>
    %7 = vector.broadcast %6 : vector<1x128xf32> to vector<8x128xf32>
    %8 = arith.addf %5, %7 : vector<8x128xf32>
    %9 = math.tanh %8 : vector<8x128xf32>
    %c96_i32 = arith.constant 96 : i32
    %10 = tpu.dynamic_rotate %8 by %c96_i32 dim 1 : vector<8x128xf32>, i32 -> vector<8x128xf32>
    %11 = arith.negf %10 : vector<8x128xf32>
    %12 = math.exp %11 : vector<8x128xf32>
    %cst_6 = arith.constant 1.000000e+00 : f32
    %13 = vector.broadcast %cst_6 : f32 to vector<8x128xf32>
    %14 = arith.addf %13, %12 : vector<8x128xf32>
    %15 = arith.divf %13, %14 : vector<8x128xf32>
    %16 = arith.mulf %9, %15 : vector<8x128xf32>
    %c0_7 = arith.constant 0 : index
    %c0_8 = arith.constant 0 : index
    %17 = vector.load %arg5[%c0_7, %c0_8] : memref<1x128xf32, #tpu.memory_space<vmem>>, vector<1x128xf32>
    %cst_9 = arith.constant dense<0.000000e+00> : vector<1x8xf32>
    %18 = tpu.matmul %17, %16, %cst_9 {dimension_numbers = #tpu.dot_dimension_numbers<[1], [1], [0], [0], [0, 0, 1, 0], [], []>} : vector<1x128xf32>, vector<8x128xf32>, vector<1x8xf32> -> vector<1x8xf32>
    %c1_i32 = arith.constant 1 : i32
    %19 = arith.muli %arg0, %c1_i32 : i32
    %20 = arith.addi %19, %arg1 : i32
    %c8_i32 = arith.constant 8 : i32
    %21 = arith.muli %20, %c8_i32 : i32
    %22 = tpu.iota {dimensions = array<i32: 1>} : vector<1x8xi32>
    %23 = vector.broadcast %21 : i32 to vector<1x8xi32>
    %24 = arith.addi %23, %22 : vector<1x8xi32>
    %c8_i32_10 = arith.constant 8 : i32
    %25 = vector.broadcast %c8_i32_10 : i32 to vector<1x8xi32>
    %26 = arith.cmpi slt, %24, %25 : vector<1x8xi32>
    %cst_11 = arith.constant -1.000000e+30 : f32
    %27 = vector.broadcast %cst_11 : f32 to vector<1x8xf32>
    %28 = arith.select %26, %18, %27 : vector<1x8xi1>, vector<1x8xf32>
    %29 = vector.shape_cast %28 : vector<1x8xf32> to vector<1x1x8xf32>
    %c0_12 = arith.constant 0 : index
    %c0_13 = arith.constant 0 : index
    %c0_14 = arith.constant 0 : index
    %30 = vector.load %arg6[%c0_12, %c0_13, %c0_14] : memref<1x1x8xf32, #tpu.memory_space<vmem>>, vector<1x1x8xf32>
    tpu.vector_store %arg6[%c0_12, %c0_13, %c0_14], %29 {strides = array<i32>} : memref<1x1x8xf32, #tpu.memory_space<vmem>>, vector<1x1x8xf32>,
    %c0_15 = arith.constant 0 : index
    %c0_16 = arith.constant 0 : index
    %31 = vector.load %arg10[%c0_15, %c0_16] : memref<1x1xf32, #tpu.memory_space<vmem>>, vector<1x1xf32>
    %cst_17 = arith.constant dense<0xFF800000> : vector<1xf32>
    %32 = vector.multi_reduction <maximumf>, %28, %cst_17 [1] : vector<1x8xf32> to vector<1xf32>
    %33 = vector.shape_cast %32 : vector<1xf32> to vector<1x1xf32>
    %34 = arith.maximumf %31, %33 : vector<1x1xf32>
    %35 = arith.subf %31, %34 : vector<1x1xf32>
    %36 = math.exp %35 : vector<1x1xf32>
    %37 = vector.broadcast %34 : vector<1x1xf32> to vector<1x8xf32>
    %38 = arith.subf %28, %37 : vector<1x8xf32>
    %39 = math.exp %38 : vector<1x8xf32>
    %c0_18 = arith.constant 0 : index
    %c0_19 = arith.constant 0 : index
    %40 = vector.load %arg11[%c0_18, %c0_19] : memref<1x1xf32, #tpu.memory_space<vmem>>, vector<1x1xf32>
    %41 = arith.mulf %36, %40 : vector<1x1xf32>
    %cst_20 = arith.constant dense<0.000000e+00> : vector<1xf32>
    %42 = vector.multi_reduction <add>, %39, %cst_20 [1] : vector<1x8xf32> to vector<1xf32>
    %43 = vector.shape_cast %42 : vector<1xf32> to vector<1x1xf32>
    %44 = arith.addf %41, %43 : vector<1x1xf32>
    %c0_21 = arith.constant 0 : index
    %c0_22 = arith.constant 0 : index
    %45 = vector.load %arg11[%c0_21, %c0_22] : memref<1x1xf32, #tpu.memory_space<vmem>>, vector<1x1xf32>
    tpu.vector_store %arg11[%c0_21, %c0_22], %44 {strides = array<i32>} : memref<1x1xf32, #tpu.memory_space<vmem>>, vector<1x1xf32>,
    %c0_23 = arith.constant 0 : index
    %c0_24 = arith.constant 0 : index
    %46 = vector.load %arg12[%c0_23, %c0_24] : memref<1x256xf32, #tpu.memory_space<vmem>>, vector<1x256xf32>
    %47 = vector.broadcast %36 : vector<1x1xf32> to vector<1x256xf32>
    %48 = arith.mulf %47, %46 : vector<1x256xf32>
    %cst_25 = arith.constant dense<0.000000e+00> : vector<1x256xf32>
    %49 = tpu.matmul %39, %3, %cst_25 {dimension_numbers = #tpu.dot_dimension_numbers<[1], [0], [0], [1], [0, 0, 1, 1], [], []>} : vector<1x8xf32>, vector<8x256xf32>, vector<1x256xf32> -> vector<1x256xf32>
    %50 = arith.addf %48, %49 : vector<1x256xf32>
    %c0_26 = arith.constant 0 : index
    %c0_27 = arith.constant 0 : index
    %51 = vector.load %arg12[%c0_26, %c0_27] : memref<1x256xf32, #tpu.memory_space<vmem>>, vector<1x256xf32>
    tpu.vector_store %arg12[%c0_26, %c0_27], %50 {strides = array<i32>} : memref<1x256xf32, #tpu.memory_space<vmem>>, vector<1x256xf32>,
    %c0_28 = arith.constant 0 : index
    %c0_29 = arith.constant 0 : index
    %52 = vector.load %arg10[%c0_28, %c0_29] : memref<1x1xf32, #tpu.memory_space<vmem>>, vector<1x1xf32>
    tpu.vector_store %arg10[%c0_28, %c0_29], %34 {strides = array<i32>} : memref<1x1xf32, #tpu.memory_space<vmem>>, vector<1x1xf32>,
    %c0_i32_30 = arith.constant 0 : i32
    %53 = arith.cmpi eq, %arg1, %c0_i32_30 : i32
    %54 = arith.extui %53 : i1 to i32
    %c0_i32_31 = arith.constant 0 : i32
    %55 = arith.cmpi ne, %54, %c0_i32_31 : i32
    scf.if %55 {
      %c0_32 = arith.constant 0 : index
      %c0_33 = arith.constant 0 : index
      %56 = vector.load %arg10[%c0_32, %c0_33] : memref<1x1xf32, #tpu.memory_space<vmem>>, vector<1x1xf32>
      %57 = vector.shape_cast %56 : vector<1x1xf32> to vector<1x1x1xf32>
      %58 = vector.shape_cast %57 : vector<1x1x1xf32> to vector<1x1x1xf32>
      %59 = vector.broadcast %58 : vector<1x1x1xf32> to vector<1x1x128xf32>
      %c0_34 = arith.constant 0 : index
      %c0_35 = arith.constant 0 : index
      %c0_36 = arith.constant 0 : index
      %60 = vector.load %arg7[%c0_34, %c0_35, %c0_36] : memref<1x1x128xf32, #tpu.memory_space<vmem>>, vector<1x1x128xf32>
      tpu.vector_store %arg7[%c0_34, %c0_35, %c0_36], %59 {strides = array<i32>} : memref<1x1x128xf32, #tpu.memory_space<vmem>>, vector<1x1x128xf32>,
      %c0_37 = arith.constant 0 : index
      %c0_38 = arith.constant 0 : index
      %61 = vector.load %arg11[%c0_37, %c0_38] : memref<1x1xf32, #tpu.memory_space<vmem>>, vector<1x1xf32>
      %62 = vector.shape_cast %61 : vector<1x1xf32> to vector<1x1x1xf32>
      %63 = vector.shape_cast %62 : vector<1x1x1xf32> to vector<1x1x1xf32>
      %64 = vector.broadcast %63 : vector<1x1x1xf32> to vector<1x1x128xf32>
      %c0_39 = arith.constant 0 : index
      %c0_40 = arith.constant 0 : index
      %c0_41 = arith.constant 0 : index
      %65 = vector.load %arg8[%c0_39, %c0_40, %c0_41] : memref<1x1x128xf32, #tpu.memory_space<vmem>>, vector<1x1x128xf32>
      tpu.vector_store %arg8[%c0_39, %c0_40, %c0_41], %64 {strides = array<i32>} : memref<1x1x128xf32, #tpu.memory_space<vmem>>, vector<1x1x128xf32>,
      %c0_42 = arith.constant 0 : index
      %c0_43 = arith.constant 0 : index
      %66 = vector.load %arg12[%c0_42, %c0_43] : memref<1x256xf32, #tpu.memory_space<vmem>>, vector<1x256xf32>
      %67 = vector.shape_cast %66 : vector<1x256xf32> to vector<1x1x256xf32>
      %c0_44 = arith.constant 0 : index
      %c0_45 = arith.constant 0 : index
      %c0_46 = arith.constant 0 : index
      %68 = vector.load %arg9[%c0_44, %c0_45, %c0_46] : memref<1x1x256xf32, #tpu.memory_space<vmem>>, vector<1x1x256xf32>
      tpu.vector_store %arg9[%c0_44, %c0_45, %c0_46], %67 {strides = array<i32>} : memref<1x1x256xf32, #tpu.memory_space<vmem>>, vector<1x1x256xf32>,
    } else {
    }
    return
  }
  func.func @transform_0(%arg0: i32, %arg1: i32) -> (i32, i32) {
    %c1_i32 = arith.constant 1 : i32
    %0 = arith.muli %arg0, %c1_i32 : i32
    %1 = arith.addi %0, %arg1 : i32
    %c0_i32 = arith.constant 0 : i32
    %c0_i32_0 = arith.constant 0 : i32
    return %1, %c0_i32 : i32, i32
  }
  func.func @transform_1(%arg0: i32, %arg1: i32) -> (i32, i32) {
    %c0_i32 = arith.constant 0 : i32
    %c0_i32_0 = arith.constant 0 : i32
    %c0_i32_1 = arith.constant 0 : i32
    return %c0_i32, %c0_i32_0 : i32, i32
  }
  func.func @transform_2(%arg0: i32, %arg1: i32) -> (i32, i32) {
    %c0_i32 = arith.constant 0 : i32
    %c0_i32_0 = arith.constant 0 : i32
    %c0_i32_1 = arith.constant 0 : i32
    return %c0_i32, %c0_i32_0 : i32, i32
  }
  func.func @transform_3(%arg0: i32, %arg1: i32) -> (i32, i32) {
    %c0_i32 = arith.constant 0 : i32
    %c0_i32_0 = arith.constant 0 : i32
    %c0_i32_1 = arith.constant 0 : i32
    return %c0_i32, %c0_i32_0 : i32, i32
  }
  func.func @transform_4(%arg0: i32, %arg1: i32) -> (i32, i32, i32) {
    %c0_i32 = arith.constant 0 : i32
    %c0_i32_0 = arith.constant 0 : i32
    return %arg0, %c0_i32, %arg1 : i32, i32, i32
  }
  func.func @transform_5(%arg0: i32, %arg1: i32) -> (i32, i32, i32) {
    %c0_i32 = arith.constant 0 : i32
    %c0_i32_0 = arith.constant 0 : i32
    %c0_i32_1 = arith.constant 0 : i32
    return %arg0, %c0_i32, %c0_i32_0 : i32, i32, i32
  }
  func.func @transform_6(%arg0: i32, %arg1: i32) -> (i32, i32, i32) {
    %c0_i32 = arith.constant 0 : i32
    %c0_i32_0 = arith.constant 0 : i32
    %c0_i32_1 = arith.constant 0 : i32
    return %arg0, %c0_i32, %c0_i32_0 : i32, i32, i32
  }
  func.func @transform_7(%arg0: i32, %arg1: i32) -> (i32, i32, i32) {
    %c0_i32 = arith.constant 0 : i32
    %c0_i32_0 = arith.constant 0 : i32
    %c0_i32_1 = arith.constant 0 : i32
    return %arg0, %c0_i32, %c0_i32_0 : i32, i32, i32
  }
}

</mosaic_0001>

<llo_original>
// kernel: tpu_custom_call.1
$region0: #{tpu_custom_call.1}
  #allocation0 [shape = 'u32[]', space=smem, size = 0x4, offset = 0x4, fixed_abs, tag = 'smem constant byte address 0x4 - core index']
  #allocation1 [shape = 'u32[144,128]{1,0:T(1,128)}', space=vmem, size = 0x12000, scoped, tag = 'internal scratch']
  #allocation2 [shape = 'f32[1,1]{1,0:T(1,128)}', space=vmem, size = 0x200, scoped, tag = 'scratch operand']
  #allocation3 [shape = 'f32[1,1]{1,0:T(1,128)}', space=vmem, size = 0x200, scoped, tag = 'scratch operand']
  #allocation4 [shape = 'f32[1,256]{1,0:T(1,128)}', space=vmem, size = 0x400, scoped, tag = 'scratch operand']
  %s0 = inlined_call_operand.hbm [shape: f32[8,256], index: 0, kind: input, shape index: {}]
  %s1 = inlined_call_operand.hbm [shape: f32[256,128], index: 1, kind: input, shape index: {}]
  %s2 = inlined_call_operand.vmem [shape: f32[1,128], index: 2, kind: input, shape index: {}]
  %s3 = inlined_call_operand.vmem [shape: f32[1,128], index: 3, kind: input, shape index: {}]
  %s4 = inlined_call_operand.hbm [shape: f32[1,1,8], index: 4, kind: output, shape index: {0}]
  %s5 = inlined_call_operand.hbm [shape: f32[1,1,128], index: 5, kind: output, shape index: {1}]
  %s6 = inlined_call_operand.hbm [shape: f32[1,1,128], index: 6, kind: output, shape index: {2}]
  %s7 = inlined_call_operand.hbm [shape: f32[1,1,256], index: 7, kind: output, shape index: {3}]
  %8 = xla_tuple %s4, %s5, %s6, %s7
  %s9 = sld [smem:[#allocation0]]
  $region66: #{tpu_custom_call.1} parent=0
    _
  %s11 = ssub.s32 1, %s9
  %s12 = scalar_select 0, %s11, %s9
  $region1: #{tpu_custom_call.1} parent=0
    #allocation5 [shape = 'u8[8192]{0}', space=vmem, size = 0x2000, scoped, tag = 'input window, operand 0, single buffered']
    #allocation6 [shape = 's32[1]{0}', space=sflag, size = 0x4, scoped, tag = 'scoped memory for tpu_custom_call.1']
    #allocation7 [shape = 's32[1]{0}', space=sflag, size = 0x4, scoped, tag = 'scoped memory for tpu_custom_call.1']
    #allocation8 [shape = 'u8[131072]{0}', space=vmem, size = 0x20000, scoped, tag = 'input window, operand 1, single buffered']
    #allocation9 [shape = 's32[1]{0}', space=sflag, size = 0x4, scoped, tag = 'scoped memory for tpu_custom_call.1']
    #allocation10 [shape = 'u8[512]{0}', space=vmem, size = 0x400, scoped, tag = 'output window, operand 0, single buffered']
    #allocation11 [shape = 'u8[512]{0}', space=vmem, size = 0x400, scoped, tag = 'output window, operand 1, single buffered']
    #allocation12 [shape = 's32[1]{0}', space=sflag, size = 0x4, scoped, tag = 'scoped memory for tpu_custom_call.1']
    #allocation13 [shape = 'u8[512]{0}', space=vmem, size = 0x400, scoped, tag = 'output window, operand 2, single buffered']
    #allocation14 [shape = 'u8[1024]{0}', space=vmem, size = 0x400, scoped, tag = 'output window, operand 3, single buffered']
    #allocation15 [shape = 's32[1]{0}', space=sflag, size = 0x4, scoped, tag = 'scoped memory for tpu_custom_call.1']
    %13 = vsyncpa [#allocation6], 0
    %14 = vsyncpa [#allocation9], 0
    %15 = vsyncpa [#allocation7], 0
    %16 = vsyncpa [#allocation12], 0
    %17 = vsyncpa [#allocation15], 0
    // Predicated region
    $region2: #{tpu_custom_call.1} parent=1 // pred_check
      _
    $region3: #{tpu_custom_call.1} parent=1 // pred_check_branch
      %19 = sbr.rel (0) target = $region5
    $region4: #{tpu_custom_call.1} parent=1 // pred_region
      %s20 = sadd.s32 0, 0
      %s22 = ssub.s32 256, 256
      %23 = vsyncadd [#allocation6], %s22
      %s24 = smul.addr %s20, 2
      %s25 = smul.addr %s24, 128
      %s26 = scalar_lea.hbm %s0, %s25
      %s28 = sshll.u32 [#allocation5], 4
      %s29 = int_to_ptr.vmem [resolvable:$true] %s28
      %31 = dma.hbm_to_vmem [thread:$0]  %s26, 256, %s29, [#allocation6]
    $region5: #{tpu_custom_call.1} parent=1 // pred_fallthru
      _
    // Predicated region
    $region6: #{tpu_custom_call.1} parent=1 // pred_check
      _
    $region7: #{tpu_custom_call.1} parent=1 // pred_check_branch
      %33 = sbr.rel (0) target = $region9
    $region8: #{tpu_custom_call.1} parent=1 // pred_region
      %s35 = ssub.s32 4096, 4096
      %36 = vsyncadd [#allocation9], %s35
      %s37 = sshll.u32 [#allocation8], 4
      %s38 = int_to_ptr.vmem [resolvable:$true] %s37
      %43 = dma.hbm_to_vmem [thread:$0]  %s1, 4096, %s38, [#allocation9], 128, 128, 8
    $region9: #{tpu_custom_call.1} parent=1 // pred_fallthru
      _
    // Predicated region
    $region10: #{tpu_custom_call.1} parent=1 // pred_check
      _
    $region11: #{tpu_custom_call.1} parent=1 // pred_check_branch
      %45 = sbr.rel (0) target = $region13
    $region12: #{tpu_custom_call.1} parent=1 // pred_region
      _
    $region13: #{tpu_custom_call.1} parent=1 // pred_fallthru
      _
    // Predicated region
    $region14: #{tpu_custom_call.1} parent=1 // pred_check
      _
    $region15: #{tpu_custom_call.1} parent=1 // pred_check_branch
      %47 = sbr.rel (0) target = $region17
    $region16: #{tpu_custom_call.1} parent=1 // pred_region
      _
    $region17: #{tpu_custom_call.1} parent=1 // pred_fallthru
      _
    // Predicated region
    $region18: #{tpu_custom_call.1} parent=1 // pred_check
      _
    $region19: #{tpu_custom_call.1} parent=1 // pred_check_branch
      %49 = sbr.rel (0) target = $region21
    $region20: #{tpu_custom_call.1} parent=1 // pred_region
      %50 = dma.done [#allocation6], 256
    $region21: #{tpu_custom_call.1} parent=1 // pred_fallthru
      _
    // Predicated region
    $region22: #{tpu_custom_call.1} parent=1 // pred_check
      _
    $region23: #{tpu_custom_call.1} parent=1 // pred_check_branch
      %52 = sbr.rel (0) target = $region25
    $region24: #{tpu_custom_call.1} parent=1 // pred_region
      %53 = dma.done [#allocation9], 4096
    $region25: #{tpu_custom_call.1} parent=1 // pred_fallthru
      _
    %s54 = sadd.s32 0, 0
    %p55 = scmp.eq.s32.totalorder 0, 0
    // Predicated region
    $region26: #{tpu_custom_call.1} parent=1 // pred_check
      %p56 = pneg %p55
    $region27: #{tpu_custom_call.1} parent=1 // pred_check_branch
      %58 = sbr.rel (%p56) target = $region29
    $region28: #{tpu_custom_call.1} parent=1 // pred_region
      %vm59 = vcmask 0
      %60 = vst.msk [vmem:[#allocation2] sm:$0x1] %vm59, -1e+30
      %61 = vst.msk [vmem:[#allocation3] sm:$0x1] %vm59, 0.0
      %v62 = vlaneseq
      %vm63 = vcmp.ge.s32.totalorder %v62, 0
      %vm64 = vcmp.lt.s32.totalorder %v62, 256
      %vm65 = vmand %vm63, %vm64
      %66 = vst.msk [vmem:[#allocation4] sm:$0x3] %vm65, 0.0
    $region29: #{tpu_custom_call.1} parent=1 // pred_fallthru
      _
    %v67 = vld [vmem:[#allocation5] sm:$0xff]
    %v68 = vld [vmem:[#allocation5 + $0x8] sm:$0xff]
    %v69 = vld [vmem:[#allocation8] sm:$0xff]
    %v70 = vld [vmem:[#allocation8 + $0x8] sm:$0xff]
    %v71 = vld [vmem:[#allocation8 + $0x10] sm:$0xff]
    %v72 = vld [vmem:[#allocation8 + $0x18] sm:$0xff]
    %v73 = vld [vmem:[#allocation8 + $0x20] sm:$0xff]
    %v74 = vld [vmem:[#allocation8 + $0x28] sm:$0xff]
    %v75 = vld [vmem:[#allocation8 + $0x30] sm:$0xff]
    %v76 = vld [vmem:[#allocation8 + $0x38] sm:$0xff]
    %v77 = vld [vmem:[#allocation8 + $0x40] sm:$0xff]
    %v78 = vld [vmem:[#allocation8 + $0x48] sm:$0xff]
    %v79 = vld [vmem:[#allocation8 + $0x50] sm:$0xff]
    %v80 = vld [vmem:[#allocation8 + $0x58] sm:$0xff]
    %v81 = vld [vmem:[#allocation8 + $0x60] sm:$0xff]
    %v82 = vld [vmem:[#allocation8 + $0x68] sm:$0xff]
    %v83 = vld [vmem:[#allocation8 + $0x70] sm:$0xff]
    %v84 = vld [vmem:[#allocation8 + $0x78] sm:$0xff]
    %v85 = vld [vmem:[#allocation8 + $0x80] sm:$0xff]
    %v86 = vld [vmem:[#allocation8 + $0x88] sm:$0xff]
    %v87 = vld [vmem:[#allocation8 + $0x90] sm:$0xff]
    %v88 = vld [vmem:[#allocation8 + $0x98] sm:$0xff]
    %v89 = vld [vmem:[#allocation8 + $0xa0] sm:$0xff]
    %v90 = vld [vmem:[#allocation8 + $0xa8] sm:$0xff]
    %v91 = vld [vmem:[#allocation8 + $0xb0] sm:$0xff]
    %v92 = vld [vmem:[#allocation8 + $0xb8] sm:$0xff]
    %v93 = vld [vmem:[#allocation8 + $0xc0] sm:$0xff]
    %v94 = vld [vmem:[#allocation8 + $0xc8] sm:$0xff]
    %v95 = vld [vmem:[#allocation8 + $0xd0] sm:$0xff]
    %v96 = vld [vmem:[#allocation8 + $0xd8] sm:$0xff]
    %v97 = vld [vmem:[#allocation8 + $0xe0] sm:$0xff]
    %v98 = vld [vmem:[#allocation8 + $0xe8] sm:$0xff]
    %v99 = vld [vmem:[#allocation8 + $0xf0] sm:$0xff]
    %v100 = vld [vmem:[#allocation8 + $0xf8] sm:$0xff]
    %v101 = vld [vmem:[%s2] sm:$0x1]
    %v103 = vlaneseq
    %v104 = vshrl.u32 %v103, 7
    %v105 = vsub.s32 0, %v104
    %v106 = vrot.slane %v101, %v105
    %108 = vmatprep.subr.mxu0 0.0
    %109 = vmatpush1.msra.mxu0 %v69
    %110 = vmatprep.subr.mxu0 0.0
    %111 = vmatpush1.msra.mxu0 %v70
    %112 = vmatprep.subr.mxu0 0.0
    %113 = vmatpush1.msra.mxu0 %v71
    %114 = vmatprep.subr.mxu0 0.0
    %115 = vmatpush1.msra.mxu0 %v72
    %116 = vmatprep.subr.mxu0 0.0
    %117 = vmatpush1.msra.mxu0 %v73
    %118 = vmatprep.subr.mxu0 0.0
    %119 = vmatpush1.msra.mxu0 %v74
    %120 = vmatprep.subr.mxu0 0.0
    %121 = vmatpush1.msra.mxu0 %v75
    %122 = vmatprep.subr.mxu0 0.0
    %123 = vmatpush1.msra.mxu0 %v76
    %124 = vmatprep.subr.mxu0 0.0
    %125 = vmatpush1.msra.mxu0 %v77
    %126 = vmatprep.subr.mxu0 0.0
    %127 = vmatpush1.msra.mxu0 %v78
    %128 = vmatprep.subr.mxu0 0.0
    %129 = vmatpush1.msra.mxu0 %v79
    %130 = vmatprep.subr.mxu0 0.0
    %131 = vmatpush1.msra.mxu0 %v80
    %132 = vmatprep.subr.mxu0 0.0
    %133 = vmatpush1.msra.mxu0 %v81
    %134 = vmatprep.subr.mxu0 0.0
    %135 = vmatpush1.msra.mxu0 %v82
    %136 = vmatprep.subr.mxu0 0.0
    %137 = vmatpush1.msra.mxu0 %v83
    %138 = vmatprep.subr.mxu0 0.0
    %139 = vmatpush1.msra.mxu0 %v84
    %140 = vmatprep.subr.mxu0 0.0
    %141 = vmatpush1.msra.mxu0 %v85
    %142 = vmatprep.subr.mxu0 0.0
    %143 = vmatpush1.msra.mxu0 %v86
    %144 = vmatprep.subr.mxu0 0.0
    %145 = vmatpush1.msra.mxu0 %v87
    %146 = vmatprep.subr.mxu0 0.0
    %147 = vmatpush1.msra.mxu0 %v88
    %148 = vmatprep.subr.mxu0 0.0
    %149 = vmatpush1.msra.mxu0 %v89
    %150 = vmatprep.subr.mxu0 0.0
    %151 = vmatpush1.msra.mxu0 %v90
    %152 = vmatprep.subr.mxu0 0.0
    %153 = vmatpush1.msra.mxu0 %v91
    %154 = vmatprep.subr.mxu0 0.0
    %155 = vmatpush1.msra.mxu0 %v92
    %156 = vmatprep.subr.mxu0 0.0
    %157 = vmatpush1.msra.mxu0 %v93
    %158 = vmatprep.subr.mxu0 0.0
    %159 = vmatpush1.msra.mxu0 %v94
    %160 = vmatprep.subr.mxu0 0.0
    %161 = vmatpush1.msra.mxu0 %v95
    %162 = vmatprep.subr.mxu0 0.0
    %163 = vmatpush1.msra.mxu0 %v96
    %164 = vmatprep.subr.mxu0 0.0
    %165 = vmatpush1.msra.mxu0 %v97
    %166 = vmatprep.subr.mxu0 0.0
    %167 = vmatpush1.msra.mxu0 %v98
    %168 = vmatprep.subr.mxu0 0.0
    %169 = vmatpush1.msra.mxu0 %v99
    %170 = vmatprep.subr.mxu0 0.0
    %171 = vmatpush1.msra.mxu0 %v100
    %172 = vmatprep.mubr.f32.mxu0 %v68
    %173 = vmatmul.mubr.f32.gmra.mrb[0].mxu0 %v67
    %v174 = vpop.f32.mrb[0].mxu0
    %v175 = vadd.f32 %v106, %v174
    %v176 = vpop.f32.mrb[0].mxu0
    %177 = vdwg.mxu0
    %v178 = vtanh.pop %v175
    %179 = vrot.lane.b32.xlu0 %v175, 96
    %v180 = vpop.permute.xlu0 %179
    %v181 = vxor.u32 %v180, 2147483648
    %v182 = vmul.f32 %v181, 1.442695
    %v183 = vpow.pop %v182
    %v184 = vadd.f32 %v183, 1.0
    %v185 = vrcp.pop %v184
    %v186 = vmul.f32 1.0, %v185
    %v187 = vmul.f32 %v178, %v186
    %v188 = vld [vmem:[%s3] sm:$0x1]
    %189 = vmatprep.subr.mxu0 0.0
    %190 = vmatpush1.xpose.msra.mxu0 %v187
    %191 = vmatprep.subr.mxu0 0.0
    %192 = vmatpush1.xpose.msra.mxu0 0.0
    %193 = vmatprep.subr.mxu0 0.0
    %194 = vmatpush1.xpose.msra.mxu0 0.0
    %195 = vmatprep.subr.mxu0 0.0
    %196 = vmatpush1.xpose.msra.mxu0 0.0
    %197 = vmatprep.subr.mxu0 0.0
    %198 = vmatpush1.xpose.msra.mxu0 0.0
    %199 = vmatprep.subr.mxu0 0.0
    %200 = vmatpush1.xpose.msra.mxu0 0.0
    %201 = vmatprep.subr.mxu0 0.0
    %202 = vmatpush1.xpose.msra.mxu0 0.0
    %203 = vmatprep.subr.mxu0 0.0
    %204 = vmatpush1.xpose.msra.mxu0 0.0
    %205 = vmatprep.subr.mxu0 0.0
    %206 = vmatpush1.xpose.msra.mxu0 0.0
    %207 = vmatprep.subr.mxu0 0.0
    %208 = vmatpush1.xpose.msra.mxu0 0.0
    %209 = vmatprep.subr.mxu0 0.0
    %210 = vmatpush1.xpose.msra.mxu0 0.0
    %211 = vmatprep.subr.mxu0 0.0
    %212 = vmatpush1.xpose.msra.mxu0 0.0
    %213 = vmatprep.subr.mxu0 0.0
    %214 = vmatpush1.xpose.msra.mxu0 0.0
    %215 = vmatprep.subr.mxu0 0.0
    %216 = vmatpush1.xpose.msra.mxu0 0.0
    %217 = vmatprep.subr.mxu0 0.0
    %218 = vmatpush1.xpose.msra.mxu0 0.0
    %219 = vmatprep.subr.mxu0 0.0
    %220 = vmatpush1.xpose.msra.mxu0 0.0
    %221 = vmatprep.subr.mxu0 0.0
    %222 = vmatpush1.xpose.msra.mxu0 0.0
    %223 = vmatprep.subr.mxu0 0.0
    %224 = vmatpush1.xpose.msra.mxu0 0.0
    %225 = vmatprep.subr.mxu0 0.0
    %226 = vmatpush1.xpose.msra.mxu0 0.0
    %227 = vmatprep.subr.mxu0 0.0
    %228 = vmatpush1.xpose.msra.mxu0 0.0
    %229 = vmatprep.subr.mxu0 0.0
    %230 = vmatpush1.xpose.msra.mxu0 0.0
    %231 = vmatprep.subr.mxu0 0.0
    %232 = vmatpush1.xpose.msra.mxu0 0.0
    %233 = vmatprep.subr.mxu0 0.0
    %234 = vmatpush1.xpose.msra.mxu0 0.0
    %235 = vmatprep.subr.mxu0 0.0
    %236 = vmatpush1.xpose.msra.mxu0 0.0
    %237 = vmatprep.subr.mxu0 0.0
    %238 = vmatpush1.xpose.msra.mxu0 0.0
    %239 = vmatprep.subr.mxu0 0.0
    %240 = vmatpush1.xpose.msra.mxu0 0.0
    %241 = vmatprep.subr.mxu0 0.0
    %242 = vmatpush1.xpose.msra.mxu0 0.0
    %243 = vmatprep.subr.mxu0 0.0
    %244 = vmatpush1.xpose.msra.mxu0 0.0
    %245 = vmatprep.subr.mxu0 0.0
    %246 = vmatpush1.xpose.msra.mxu0 0.0
    %247 = vmatprep.subr.mxu0 0.0
    %248 = vmatpush1.xpose.msra.mxu0 0.0
    %249 = vmatprep.subr.mxu0 0.0
    %250 = vmatpush1.xpose.msra.mxu0 0.0
    %251 = vmatprep.subr.mxu0 0.0
    %252 = vmatpush1.xpose.msra.mxu0 0.0
    %253 = vmatprep.mubr.f32.mxu0 0.0
    %254 = vmatmul.mubr.f32.gmra.mrb[0].mxu0 %v188
    %v255 = vpop.f32.mrb[0].mxu0
    %v256 = vadd.f32 0.0, %v255
    %v257 = vpop.f32.mrb[0].mxu0
    %258 = vdwg.mxu0
    %s259 = sadd.s32 0, 0
    %s260 = smul.u32 %s259, 8
    %v261 = vlaneseq
    %v262 = vand.u32 %v261, 127
    %v263 = vstv %s260
    %v264 = vadd.s32 %v263, %v262
    %vm265 = vcmp.lt.s32.totalorder %v264, 8
    %v266 = vsel %vm265, %v256, -1e+30
    %vm267 = vcmask 57344
    %268 = vst.msk [vmem:[#allocation10] sm:$0x1] %vm267, %v266
    %v269 = vld [vmem:[#allocation2] sm:$0x1]
    %v270 = vsel %vm267, %v266, -inf
    %271 = vmax.xlane.f32.xlu0 %v270
    %v272 = vpop.xlane.xlu0 %271
    %v273 = vmax.f32 %v269, %v272
    %v274 = vsub.f32 %v269, %v273
    %v275 = vmul.f32 %v274, 1.442695
    %v276 = vpow.pop %v275
    %278 = vset.pattern.permute.xlu0 0
    %279 = vperm.xlu0 %278, %v273
    %v280 = vpop.permute.xlu0 %279
    %v282 = vlaneseq
    %v283 = vshrl.u32 %v282, 7
    %v284 = vsub.s32 0, %v283
    %v285 = vrot.slane %v280, %v284
    %v286 = vsub.f32 %v266, %v285
    %v287 = vmul.f32 %v286, 1.442695
    %v288 = vpow.pop %v287
    %v289 = vld [vmem:[#allocation3] sm:$0x1]
    %v290 = vmul.f32 %v276, %v289
    %v291 = vsel %vm267, %v288, 0.0
    %292 = vadd.xlane.f32.xlu0 %v291
    %v293 = vpop.xlane.xlu0 %292
    %v294 = vadd.f32 %v290, %v293
    %vm295 = vcmask 0
    %296 = vst.msk [vmem:[#allocation3] sm:$0x1] %vm295, %v294
    %v297 = vld [vmem:[#allocation4] sm:$0x3]
    %299 = vset.pattern.permute.xlu0 0
    %300 = vperm.xlu0 %299, %v276
    %v301 = vpop.permute.xlu0 %300
    %v303 = vlaneseq
    %v304 = vshrl.u32 %v303, 7
    %v305 = vsub.s32 0, %v304
    %v306 = vrot.slane %v301, %v305
    %v307 = vmul.f32 %v306, %v297
    %vm308 = vcmask 64512
    %v310 = vsel %vm308, %v288, 0
    %312 = vmatprep.subr.mxu0 %v68
    %313 = vmatpush1.msra.mxu0 %v67
    %314 = vmatprep.subr.mxu0 0.0
    %315 = vmatpush1.msra.mxu0 0.0
    %316 = vmatprep.subr.mxu0 0.0
    %317 = vmatpush1.msra.mxu0 0.0
    %318 = vmatprep.subr.mxu0 0.0
    %319 = vmatpush1.msra.mxu0 0.0
    %320 = vmatprep.subr.mxu0 0.0
    %321 = vmatpush1.msra.mxu0 0.0
    %322 = vmatprep.subr.mxu0 0.0
    %323 = vmatpush1.msra.mxu0 0.0
    %324 = vmatprep.subr.mxu0 0.0
    %325 = vmatpush1.msra.mxu0 0.0
    %326 = vmatprep.subr.mxu0 0.0
    %327 = vmatpush1.msra.mxu0 0.0
    %328 = vmatprep.subr.mxu0 0.0
    %329 = vmatpush1.msra.mxu0 0.0
    %330 = vmatprep.subr.mxu0 0.0
    %331 = vmatpush1.msra.mxu0 0.0
    %332 = vmatprep.subr.mxu0 0.0
    %333 = vmatpush1.msra.mxu0 0.0
    %334 = vmatprep.subr.mxu0 0.0
    %335 = vmatpush1.msra.mxu0 0.0
    %336 = vmatprep.subr.mxu0 0.0
    %337 = vmatpush1.msra.mxu0 0.0
    %338 = vmatprep.subr.mxu0 0.0
    %339 = vmatpush1.msra.mxu0 0.0
    %340 = vmatprep.subr.mxu0 0.0
    %341 = vmatpush1.msra.mxu0 0.0
    %342 = vmatprep.subr.mxu0 0.0
    %343 = vmatpush1.msra.mxu0 0.0
    %344 = vmatprep.subr.mxu0 0.0
    %345 = vmatpush1.msra.mxu0 0.0
    %346 = vmatprep.subr.mxu0 0.0
    %347 = vmatpush1.msra.mxu0 0.0
    %348 = vmatprep.subr.mxu0 0.0
    %349 = vmatpush1.msra.mxu0 0.0
    %350 = vmatprep.subr.mxu0 0.0
    %351 = vmatpush1.msra.mxu0 0.0
    %352 = vmatprep.subr.mxu0 0.0
    %353 = vmatpush1.msra.mxu0 0.0
    %354 = vmatprep.subr.mxu0 0.0
    %355 = vmatpush1.msra.mxu0 0.0
    %356 = vmatprep.subr.mxu0 0.0
    %357 = vmatpush1.msra.mxu0 0.0
    %358 = vmatprep.subr.mxu0 0.0
    %359 = vmatpush1.msra.mxu0 0.0
    %360 = vmatprep.subr.mxu0 0.0
    %361 = vmatpush1.msra.mxu0 0.0
    %362 = vmatprep.subr.mxu0 0.0
    %363 = vmatpush1.msra.mxu0 0.0
    %364 = vmatprep.subr.mxu0 0.0
    %365 = vmatpush1.msra.mxu0 0.0
    %366 = vmatprep.subr.mxu0 0.0
    %367 = vmatpush1.msra.mxu0 0.0
    %368 = vmatprep.subr.mxu0 0.0
    %369 = vmatpush1.msra.mxu0 0.0
    %370 = vmatprep.subr.mxu0 0.0
    %371 = vmatpush1.msra.mxu0 0.0
    %372 = vmatprep.subr.mxu0 0.0
    %373 = vmatpush1.msra.mxu0 0.0
    %374 = vmatprep.subr.mxu0 0.0
    %375 = vmatpush1.msra.mxu0 0.0
    %376 = vmatprep.mubr.f32.mxu0 0.0
    %377 = vmatmul.mubr.f32.gmra.mrb[0].mxu0 %v310
    %v378 = vpop.f32.mrb[0].mxu0
    %v379 = vadd.f32 0.0, %v378
    %v380 = vpop.f32.mrb[0].mxu0
    %v381 = vadd.f32 0.0, %v380
    %382 = vdwg.mxu0
    %v385 = vcombine.low %v379, %v381
    %v387 = vunpack.c.l.s4 1966171168
    %v388 = vunpack.c.0.s8 %v387
    %v389 = vlaneseq
    %v390 = vshrl.u32 %v389, 7
    %v391 = vsub.s32 %v388, %v390
    %v392 = vrot.slane %v385, %v391
    %v394 = vunpack.c.l.s4 1966171168
    %v395 = vunpack.c.0.s8 %v394
    %v396 = vlaneseq
    %v397 = vshrl.u32 %v396, 7
    %v398 = vsub.s32 %v395, %v397
    %v399 = vrot.slane %v392, %v398
    %v401 = vadd.f32 %v307, %v399
    %v402 = vlaneseq
    %vm403 = vcmp.ge.s32.totalorder %v402, 0
    %vm404 = vcmp.lt.s32.totalorder %v402, 256
    %vm405 = vmand %vm403, %vm404
    %406 = vst.msk [vmem:[#allocation4] sm:$0x3] %vm405, %v401
    %407 = vst.msk [vmem:[#allocation2] sm:$0x1] %vm295, %v273
    // Predicated region
    $region30: #{tpu_custom_call.1} parent=1 // pred_check
      %p408 = pneg %p55
    $region31: #{tpu_custom_call.1} parent=1 // pred_check_branch
      %410 = sbr.rel (%p408) target = $region33
    $region32: #{tpu_custom_call.1} parent=1 // pred_region
      %v411 = vld [vmem:[#allocation2] sm:$0x1]
      %413 = vset.pattern.permute.xlu0 0
      %414 = vperm.xlu0 %413, %v411
      %v415 = vpop.permute.xlu0 %414
      %v417 = vlaneseq
      %v418 = vshrl.u32 %v417, 7
      %v419 = vsub.s32 0, %v418
      %v420 = vrot.slane %v415, %v419
      %421 = vst [vmem:[#allocation11] sm:$0x1] %v420
      %v422 = vld [vmem:[#allocation3] sm:$0x1]
      %424 = vset.pattern.permute.xlu0 0
      %425 = vperm.xlu0 %424, %v422
      %v426 = vpop.permute.xlu0 %425
      %v428 = vlaneseq
      %v429 = vshrl.u32 %v428, 7
      %v430 = vsub.s32 0, %v429
      %v431 = vrot.slane %v426, %v430
      %432 = vst [vmem:[#allocation13] sm:$0x1] %v431
      %v433 = vld [vmem:[#allocation4] sm:$0x3]
      %434 = vst.msk [vmem:[#allocation14] sm:$0x3] %vm405, %v433
    $region33: #{tpu_custom_call.1} parent=1 // pred_fallthru
      _
    // Predicated region
    $region34: #{tpu_custom_call.1} parent=1 // pred_check
      _
    $region35: #{tpu_custom_call.1} parent=1 // pred_check_branch
      %436 = sbr.rel (0) target = $region37
    $region36: #{tpu_custom_call.1} parent=1 // pred_region
      %s438 = ssub.s32 16, 16
      %439 = vsyncadd [#allocation7], %s438
      %s441 = sshll.u32 [#allocation10], 4
      %s442 = int_to_ptr.vmem [resolvable:$true] %s441
      %444 = dma.vmem_to_hbm [thread:$0]  %s442, 16, %s4, [#allocation7]
    $region37: #{tpu_custom_call.1} parent=1 // pred_fallthru
      _
    // Predicated region
    $region38: #{tpu_custom_call.1} parent=1 // pred_check
      _
    $region39: #{tpu_custom_call.1} parent=1 // pred_check_branch
      %446 = sbr.rel (0) target = $region41
    $region40: #{tpu_custom_call.1} parent=1 // pred_region
      %s448 = ssub.s32 16, 16
      %449 = vsyncadd [#allocation12], %s448
      %s451 = sshll.u32 [#allocation11], 4
      %s452 = int_to_ptr.vmem [resolvable:$true] %s451
      %454 = dma.vmem_to_hbm [thread:$0]  %s452, 16, %s5, [#allocation12]
    $region41: #{tpu_custom_call.1} parent=1 // pred_fallthru
      _
    // Predicated region
    $region42: #{tpu_custom_call.1} parent=1 // pred_check
      _
    $region43: #{tpu_custom_call.1} parent=1 // pred_check_branch
      %456 = sbr.rel (0) target = $region45
    $region44: #{tpu_custom_call.1} parent=1 // pred_region
      %s458 = ssub.s32 16, 16
      %459 = vsyncadd [#allocation12], %s458
      %s461 = sshll.u32 [#allocation13], 4
      %s462 = int_to_ptr.vmem [resolvable:$true] %s461
      %464 = dma.vmem_to_hbm [thread:$0]  %s462, 16, %s6, [#allocation12]
    $region45: #{tpu_custom_call.1} parent=1 // pred_fallthru
      _
    // Predicated region
    $region46: #{tpu_custom_call.1} parent=1 // pred_check
      _
    $region47: #{tpu_custom_call.1} parent=1 // pred_check_branch
      %466 = sbr.rel (0) target = $region49
    $region48: #{tpu_custom_call.1} parent=1 // pred_region
      %s468 = ssub.s32 32, 32
      %469 = vsyncadd [#allocation15], %s468
      %s471 = sshll.u32 [#allocation14], 4
      %s472 = int_to_ptr.vmem [resolvable:$true] %s471
      %474 = dma.vmem_to_hbm [thread:$0]  %s472, 32, %s7, [#allocation15]
    $region49: #{tpu_custom_call.1} parent=1 // pred_fallthru
      _
    // Predicated region
    $region50: #{tpu_custom_call.1} parent=1 // pred_check
      _
    $region51: #{tpu_custom_call.1} parent=1 // pred_check_branch
      %476 = sbr.rel (0) target = $region53
    $region52: #{tpu_custom_call.1} parent=1 // pred_region
      %477 = dma.done [#allocation7], 16
    $region53: #{tpu_custom_call.1} parent=1 // pred_fallthru
      _
    // Predicated region
    $region54: #{tpu_custom_call.1} parent=1 // pred_check
      _
    $region55: #{tpu_custom_call.1} parent=1 // pred_check_branch
      %479 = sbr.rel (0) target = $region57
    $region56: #{tpu_custom_call.1} parent=1 // pred_region
      %480 = dma.done [#allocation12], 16
    $region57: #{tpu_custom_call.1} parent=1 // pred_fallthru
      _
    // Predicated region
    $region58: #{tpu_custom_call.1} parent=1 // pred_check
      _
    $region59: #{tpu_custom_call.1} parent=1 // pred_check_branch
      %482 = sbr.rel (0) target = $region61
    $region60: #{tpu_custom_call.1} parent=1 // pred_region
      %483 = dma.done [#allocation12], 16
    $region61: #{tpu_custom_call.1} parent=1 // pred_fallthru
      _
    // Predicated region
    $region62: #{tpu_custom_call.1} parent=1 // pred_check
      _
    $region63: #{tpu_custom_call.1} parent=1 // pred_check_branch
      %485 = sbr.rel (0) target = $region65
    $region64: #{tpu_custom_call.1} parent=1 // pred_region
      %486 = dma.done [#allocation15], 32
    $region65: #{tpu_custom_call.1} parent=1 // pred_fallthru
      _
    %487 = vsyncpa [#allocation6], 1
    %488 = vsyncpa [#allocation9], 1
    %489 = vsyncpa [#allocation7], 1
    %490 = vsyncpa [#allocation12], 1
    %491 = vsyncpa [#allocation15], 1

</llo_original>
